<compile_context>
chip_gen: v6e
topology: v6e:2x2x1
jax: 0.10.0
libtpu: 0.0.40
codegen_flags: <defaults>
</compile_context>

<pallas_src>
import math

import jax
import jax.numpy as jnp
from jax.experimental import pallas as pl
from jax.experimental.pallas import tpu as pltpu


def _nearest_onehot(in_size: int, out_size: int, dtype):
    """(in_size, out_size) one-hot S with S[src(d), d] = 1,
    src(d) = (d * in_size) // out_size (integer nearest-neighbor rule)."""
    dst = jnp.arange(out_size, dtype=jnp.int32)
    src = jnp.clip((dst * in_size) // out_size, 0, in_size - 1)
    return (jnp.arange(in_size, dtype=jnp.int32)[:, None] == src[None, :]).astype(dtype)


def _upsample_matmul_kernel(x_ref, m_ref, o_ref):
    # x_ref: (rb, gf*W_in)        rows batch (n, c, row-group); lanes = gf input rows
    # m_ref: (gf*W_in, gof*W_out) constant one-hot (width gather + row replication)
    # o_ref: (rb, gof*W_out)      lanes = gof output rows (lane-dense store)
    o_ref[...] = jnp.dot(
        x_ref[...], m_ref[...], preferred_element_type=jnp.float32
    ).astype(o_ref.dtype)


def _pick_fold(N, C, H_in, W_in, H_out, W_out, itemsize):
    """Pick (gf, gof): gf consecutive input rows fold into the lane dim of one
    2-D row, producing gof output rows, with gf * H_out == gof * H_in.

    gf starts at the minimum H_in / gcd(H_in, H_out) (1 for integer scale
    factors) since MXU work is gf*W_in MACs per output element.  It is bumped
    only within a MAC budget (gf*W_in <= 64) and a 2 MiB one-hot cap, and only
    to make L = gof*W_out a multiple of 128 (else as wide as possible)."""
    g = math.gcd(H_in, H_out)
    gi0 = H_in // g
    total_rows = N * C * H_in
    mac_cap = 64          # keeps the f32 matmul well under HBM time on v5e
    m_bytes_cap = 2 << 20  # resident one-hot stays tiny (v7x VMEM = 64 MiB/TC)

    best, best_key = None, None
    m = 1
    while True:
        gf = m * gi0
        if gf > total_rows:
            break
        gof = (gf * H_out) // H_in
        K, L = gf * W_in, gof * W_out
        if m > 1 and (K > mac_cap or K * L * itemsize > m_bytes_cap):
            break
        if total_rows % gf == 0:
            if L % 128 == 0:
                key = (0, gf)
            elif L >= 128:
                key = (1, gf)
            else:
                key = (2, -L, gf)
            if best_key is None or key < best_key:
                best_key, best = key, (gf, gof)
            if L % 128 == 0:
                break          # smallest lane-dense (multiple of 128) fold found
        m += 1
    if best is None:           # unreachable (gi0 always divides N*C*H_in); safety
        best = (gi0, H_out // g)
    return best


def _pick_row_block(R, row_bytes):
    """Rows per grid step: ~4 MiB of in+out HBM traffic per step, never below
    ~1 MiB/step, >= ~8 grid steps when the problem is big enough (>= 3-4 steps
    per v7x TensorCore), rounded to a multiple of 128 for clean MXU M-tiles
    and unmasked (sub)lane tiles."""
    if R <= 128:
        return R
    rb_hi = max(128, (4 << 20) // row_bytes)     # ~4 MiB / step target
    rb_lo = max(128, (1 << 20) // row_bytes)     # floor: ~1 MiB / step
    rb_split = max(1, R // 8)                    # aim for >= ~8 grid steps
    rb = min(rb_hi, max(rb_split, rb_lo))
    rb = max(128, (rb // 128) * 128)
    return min(rb, R)


def _vmem_limit_bytes():
    """Generation-aware scoped-VMEM limit: ~60% of physical VMEM, capped.
    (v5e/v6e 128 MiB -> ~76 MiB scoped; v7x 64 MiB/TC -> ~38 MiB scoped)."""
    try:
        cap = int(pltpu.get_tpu_info().vmem_capacity_bytes)
    except Exception:
        cap = 128 * 1024 * 1024
    return max(32 * 1024 * 1024, min((cap * 3) // 5, 100 * 1024 * 1024))


def upsample_nearest(x, size=None, scale_factor=None):
    """Equivalent of Upsample(size, scale_factor, mode='nearest')(x) for 4-D NCHW."""
    N, C, H_in, W_in = x.shape
    if size is not None:
        H_out, W_out = (size, size) if isinstance(size, int) else tuple(size)
    else:
        if isinstance(scale_factor, (tuple, list)):
            sf_h, sf_w = scale_factor
        else:
            sf_h = sf_w = scale_factor
        H_out, W_out = int(math.floor(H_in * sf_h)), int(math.floor(W_in * sf_w))
    H_out, W_out = int(H_out), int(W_out)

    orig_dtype = x.dtype
    if not jnp.issubdtype(orig_dtype, jnp.floating):
        # One-hot-matmul path needs a float dtype (v7x MXU has no int path).
        # TODO(synk): exact only while integer values fit in f32's 24-bit mantissa.
        x = x.astype(jnp.float32)
    cdt = x.dtype
    itemsize = jnp.dtype(cdt).itemsize

    gf, gof = _pick_fold(N, C, H_in, W_in, H_out, W_out, itemsize)

    # Constant one-hot: width gather S_w, plus selection/replication of the gof
    # output rows of a fold from its gf input rows.  For integer scale factors
    # gf == 1 and this equals jnp.tile(S_w, (1, H_out // H_in)).
    s_w = _nearest_onehot(W_in, W_out, cdt)                       # (W_in, W_out)
    src_r = (jnp.arange(gof, dtype=jnp.int32) * H_in) // H_out    # local row source
    a_h = (jnp.arange(gf, dtype=jnp.int32)[:, None] == src_r[None, :]).astype(cdt)
    m = jnp.kron(a_h, s_w)                                        # (gf*W_in, gof*W_out)

    R = (N * C * H_in) // gf
    K = gf * W_in
    L = gof * W_out
    x2d = x.reshape(R, K)                 # layout-preserving reshape (free)

    rb = _pick_row_block(R, (K + L) * itemsize)
    grid = (pl.cdiv(R, rb),)

    out2d = pl.pallas_call(
        _upsample_matmul_kernel,
        out_shape=jax.ShapeDtypeStruct((R, L), cdt),
        grid_spec=pltpu.PrefetchScalarGridSpec(
            num_scalar_prefetch=0,
            grid=grid,
            in_specs=[
                pl.BlockSpec((rb, K), lambda i: (i, 0)),
                pl.BlockSpec((K, L), lambda i: (0, 0)),   # constant, stays resident
            ],
            out_specs=pl.BlockSpec((rb, L), lambda i: (i, 0)),
        ),
        compiler_params=pltpu.CompilerParams(
            dimension_semantics=("parallel",),
            vmem_limit_bytes=_vmem_limit_bytes(),
        ),
        cost_estimate=pl.CostEstimate(
            flops=2 * R * K * L,
            transcendentals=0,
            bytes_accessed=(R * K + R * L + K * L) * itemsize,
        ),
    )(x2d, m)

    out = out2d.reshape(N, C, H_out, W_out)   # layout-preserving reshape (free)
    if out.dtype != orig_dtype:
        out = out.astype(orig_dtype)
    return out


if __name__ == "__main__":
    key = jax.random.PRNGKey(0)
    # Module-style usage on small NCHW input.
    x = jax.random.normal(key, (2, 4, 16, 16), dtype=jnp.float32)

    def ref_nearest(x, H_out, W_out):
        H_in, W_in = x.shape[2], x.shape[3]
        hi = jnp.clip((jnp.arange(H_out) * H_in) // H_out, 0, H_in - 1)
        wi = jnp.clip((jnp.arange(W_out) * W_in) // W_out, 0, W_in - 1)
        return x[:, :, hi, :][:, :, :, wi]

    # Integer-scale path via size= (Upsample(size=(32, 32), mode='nearest')).
    out = jax.block_until_ready(upsample_nearest(x, size=(32, 32)))
    assert out.shape == (2, 4, 32, 32)
    assert jnp.allclose(out, ref_nearest(x, 32, 32), atol=1e-6), "mismatch (size path)"

    # Integer scale_factor path (the module's documented contract).
    out2 = jax.block_until_ready(upsample_nearest(x, size=None, scale_factor=2))
    assert out2.shape == (2, 4, 32, 32)
    assert jnp.allclose(out2, ref_nearest(x, 32, 32), atol=1e-6), "mismatch (scale_factor path)"

    # General (non-integer ratio) path — same kernel, minimal gcd row groups.
    out3 = jax.block_until_ready(upsample_nearest(x, size=(24, 20)))
    assert out3.shape == (2, 4, 24, 20)
    assert jnp.allclose(out3, ref_nearest(x, 24, 20), atol=1e-6), "mismatch (general size path)"

    print("KERNEL_OK")
</pallas_src>

<mosaic_0001>
module attributes {stable_mosaic.version = 11 : i64} {
  func.func @_upsample_matmul_kernel(%arg0: i32, %arg1: memref<64x32xf32, #tpu.memory_space<vmem>>, %arg2: memref<32x128xf32, #tpu.memory_space<vmem>>, %arg3: memref<64x128xf32, #tpu.memory_space<vmem>>) attributes {dimension_semantics = [#tpu.dimension_semantics<parallel>], iteration_bounds = array<i64: 1>, scalar_prefetch = 0 : i64, scratch_operands = 0 : i64, tpu.core_type = #tpu.core_type<tc>, window_params = [{transform_indices = @transform_0, window_bounds = array<i64: 64, 32>}, {pipeline_mode = #tpu.pipeline_mode<synchronous>, transform_indices = @transform_1, window_bounds = array<i64: 32, 128>}, {transform_indices = @transform_2, window_bounds = array<i64: 64, 128>}]} {
    %c0 = arith.constant 0 : index
    %c0_0 = arith.constant 0 : index
    %0 = vector.load %arg1[%c0, %c0_0] : memref<64x32xf32, #tpu.memory_space<vmem>>, vector<64x32xf32>
    %c0_1 = arith.constant 0 : index
    %c0_2 = arith.constant 0 : index
    %1 = vector.load %arg2[%c0_1, %c0_2] : memref<32x128xf32, #tpu.memory_space<vmem>>, vector<32x128xf32>
    %cst = arith.constant dense<0.000000e+00> : vector<64x128xf32>
    %2 = tpu.matmul %0, %1, %cst {dimension_numbers = #tpu.dot_dimension_numbers<[1], [0], [0], [1], [0, 0, 1, 1], [], []>} : vector<64x32xf32>, vector<32x128xf32>, vector<64x128xf32> -> vector<64x128xf32>
    %c0_3 = arith.constant 0 : index
    %c0_4 = arith.constant 0 : index
    %3 = vector.load %arg3[%c0_3, %c0_4] : memref<64x128xf32, #tpu.memory_space<vmem>>, vector<64x128xf32>
    tpu.vector_store %arg3[%c0_3, %c0_4], %2 {strides = array<i32>} : memref<64x128xf32, #tpu.memory_space<vmem>>, vector<64x128xf32>,
    return
  }
  func.func @transform_0(%arg0: i32) -> (i32, i32) {
    %c0_i32 = arith.constant 0 : i32
    %c0_i32_0 = arith.constant 0 : i32
    return %arg0, %c0_i32 : i32, i32
  }
  func.func @transform_1(%arg0: i32) -> (i32, i32) {
    %c0_i32 = arith.constant 0 : i32
    %c0_i32_0 = arith.constant 0 : i32
    %c0_i32_1 = arith.constant 0 : i32
    return %c0_i32, %c0_i32_0 : i32, i32
  }
  func.func @transform_2(%arg0: i32) -> (i32, i32) {
    %c0_i32 = arith.constant 0 : i32
    %c0_i32_0 = arith.constant 0 : i32
    return %arg0, %c0_i32 : i32, i32
  }
}

</mosaic_0001>

<llo_original>
// kernel: tpu_custom_call.1
$region0: #{tpu_custom_call.1}
  #allocation0 [shape = 'u32[]', space=smem, size = 0x4, offset = 0x4, fixed_abs, tag = 'smem constant byte address 0x4 - core index']
  #allocation1 [shape = 'u32[144,128]{1,0:T(1,128)}', space=vmem, size = 0x12000, scoped, tag = 'internal scratch']
  %s0 = inlined_call_operand.vmem [shape: f32[64,32], index: 0, kind: input, shape index: {}]
  %s1 = inlined_call_operand.vmem [shape: f32[32,128], index: 1, kind: input, shape index: {}]
  %s2 = inlined_call_operand.hbm [shape: f32[64,128], index: 2, kind: output, shape index: {}]
  %s3 = sld [smem:[#allocation0]]
  $region18: #{tpu_custom_call.1} parent=0
    _
  %s5 = ssub.s32 1, %s3
  %s6 = scalar_select 0, %s5, %s3
  $region1: #{tpu_custom_call.1} parent=0
    #allocation2 [shape = 'u8[32768]{0}', space=vmem, size = 0x8000, scoped, tag = 'output window, operand 0, single buffered']
    #allocation3 [shape = 's32[1]{0}', space=sflag, size = 0x4, scoped, tag = 'scoped memory for tpu_custom_call.1']
    %7 = vsyncpa [#allocation3], 0
    // Predicated region
    $region2: #{tpu_custom_call.1} parent=1 // pred_check
      _
    $region3: #{tpu_custom_call.1} parent=1 // pred_check_branch
      %9 = sbr.rel (0) target = $region5
    $region4: #{tpu_custom_call.1} parent=1 // pred_region
      _
    $region5: #{tpu_custom_call.1} parent=1 // pred_fallthru
      _
    // Predicated region
    $region6: #{tpu_custom_call.1} parent=1 // pred_check
      _
    $region7: #{tpu_custom_call.1} parent=1 // pred_check_branch
      %11 = sbr.rel (0) target = $region9
    $region8: #{tpu_custom_call.1} parent=1 // pred_region
      _
    $region9: #{tpu_custom_call.1} parent=1 // pred_fallthru
      _
    %v12 = vld [vmem:[%s0] sm:$0xff]
    %v13 = vld [vmem:[%s0 + $0x8] sm:$0xff]
    %v14 = vld [vmem:[%s0 + $0x10] sm:$0xff]
    %v15 = vld [vmem:[%s0 + $0x18] sm:$0xff]
    %v16 = vld [vmem:[%s0 + $0x20] sm:$0xff]
    %v17 = vld [vmem:[%s0 + $0x28] sm:$0xff]
    %v18 = vld [vmem:[%s0 + $0x30] sm:$0xff]
    %v19 = vld [vmem:[%s0 + $0x38] sm:$0xff]
    %v20 = vld [vmem:[%s1] sm:$0xff]
    %v21 = vld [vmem:[%s1 + $0x8] sm:$0xff]
    %v22 = vld [vmem:[%s1 + $0x10] sm:$0xff]
    %v23 = vld [vmem:[%s1 + $0x18] sm:$0xff]
    %vm24 = vcmask 261120
    %v26 = vsel %vm24, %v12, 0
    %v29 = vsel %vm24, %v13, 0
    %v32 = vsel %vm24, %v14, 0
    %v35 = vsel %vm24, %v15, 0
    %v38 = vsel %vm24, %v16, 0
    %v41 = vsel %vm24, %v17, 0
    %v44 = vsel %vm24, %v18, 0
    %v47 = vsel %vm24, %v19, 0
    %49 = vmatprep.subr.mxu0 0.0
    %50 = vmatpush1.msra.mxu0 0.0
    %51 = vmatprep.subr.mxu0 0.0
    %52 = vmatpush1.msra.mxu0 0.0
    %53 = vmatprep.subr.mxu0 0.0
    %54 = vmatpush1.msra.mxu0 0.0
    %55 = vmatprep.subr.mxu0 0.0
    %56 = vmatpush1.msra.mxu0 0.0
    %57 = vmatprep.subr.mxu0 0.0
    %58 = vmatpush1.msra.mxu0 0.0
    %59 = vmatprep.subr.mxu0 0.0
    %60 = vmatpush1.msra.mxu0 0.0
    %61 = vmatprep.subr.mxu0 0.0
    %62 = vmatpush1.msra.mxu0 0.0
    %63 = vmatprep.subr.mxu0 0.0
    %64 = vmatpush1.msra.mxu0 0.0
    %65 = vmatprep.subr.mxu0 0.0
    %66 = vmatpush1.msra.mxu0 0.0
    %67 = vmatprep.subr.mxu0 0.0
    %68 = vmatpush1.msra.mxu0 0.0
    %69 = vmatprep.subr.mxu0 0.0
    %70 = vmatpush1.msra.mxu0 0.0
    %71 = vmatprep.subr.mxu0 0.0
    %72 = vmatpush1.msra.mxu0 0.0
    %73 = vmatprep.subr.mxu0 0.0
    %74 = vmatpush1.msra.mxu0 %v23
    %75 = vmatprep.subr.mxu0 0.0
    %76 = vmatpush1.msra.mxu0 %v22
    %77 = vmatprep.subr.mxu0 0.0
    %78 = vmatpush1.msra.mxu0 %v21
    %79 = vmatprep.subr.mxu0 0.0
    %80 = vmatpush1.msra.mxu0 %v20
    %81 = vmatprep.subr.mxu0 0.0
    %82 = vmatpush2.msra.mxu0 0.0
    %83 = vmatprep.subr.mxu0 0.0
    %84 = vmatpush2.msra.mxu0 0.0
    %85 = vmatprep.subr.mxu0 0.0
    %86 = vmatpush2.msra.mxu0 0.0
    %87 = vmatprep.subr.mxu0 0.0
    %88 = vmatpush2.msra.mxu0 0.0
    %89 = vmatprep.subr.mxu0 0.0
    %90 = vmatpush2.msra.mxu0 0.0
    %91 = vmatprep.subr.mxu0 0.0
    %92 = vmatpush2.msra.mxu0 0.0
    %93 = vmatprep.subr.mxu0 0.0
    %94 = vmatpush2.msra.mxu0 0.0
    %95 = vmatprep.subr.mxu0 0.0
    %96 = vmatpush2.msra.mxu0 0.0
    %97 = vmatprep.subr.mxu0 0.0
    %98 = vmatpush2.msra.mxu0 0.0
    %99 = vmatprep.subr.mxu0 0.0
    %100 = vmatpush2.msra.mxu0 0.0
    %101 = vmatprep.subr.mxu0 0.0
    %102 = vmatpush2.msra.mxu0 0.0
    %103 = vmatprep.subr.mxu0 0.0
    %104 = vmatpush2.msra.mxu0 0.0
    %105 = vmatprep.subr.mxu0 0.0
    %106 = vmatpush2.msra.mxu0 0.0
    %107 = vmatprep.subr.mxu0 0.0
    %108 = vmatpush2.msra.mxu0 0.0
    %109 = vmatprep.subr.mxu0 0.0
    %110 = vmatpush2.msra.mxu0 0.0
    %111 = vmatprep.subr.mxu0 0.0
    %112 = vmatpush2.msra.mxu0 0.0
    %113 = vmatprep.mubr.f32.mxu0 0.0
    %114 = vmatmul.mubr.f32.gmra.mxu0 %v26
    %v115 = vpop.f32.mrf.mxu0
    %v116 = vadd.f32 0.0, %v115
    %v117 = vpop.f32.mrf.mxu0
    %118 = vmatprep.mubr.f32.mxu0 0.0
    %119 = vmatmul.mubr.f32.gmra.mxu0 %v29
    %v120 = vpop.f32.mrf.mxu0
    %v121 = vadd.f32 0.0, %v120
    %v122 = vpop.f32.mrf.mxu0
    %123 = vmatprep.mubr.f32.mxu0 0.0
    %124 = vmatmul.mubr.f32.gmra.mxu0 %v32
    %v125 = vpop.f32.mrf.mxu0
    %v126 = vadd.f32 0.0, %v125
    %v127 = vpop.f32.mrf.mxu0
    %128 = vmatprep.mubr.f32.mxu0 0.0
    %129 = vmatmul.mubr.f32.gmra.mxu0 %v35
    %v130 = vpop.f32.mrf.mxu0
    %v131 = vadd.f32 0.0, %v130
    %v132 = vpop.f32.mrf.mxu0
    %133 = vmatprep.mubr.f32.mxu0 0.0
    %134 = vmatmul.mubr.f32.gmra.mxu0 %v38
    %v135 = vpop.f32.mrf.mxu0
    %v136 = vadd.f32 0.0, %v135
    %v137 = vpop.f32.mrf.mxu0
    %138 = vmatprep.mubr.f32.mxu0 0.0
    %139 = vmatmul.mubr.f32.gmra.mxu0 %v41
    %v140 = vpop.f32.mrf.mxu0
    %v141 = vadd.f32 0.0, %v140
    %v142 = vpop.f32.mrf.mxu0
    %143 = vmatprep.mubr.f32.mxu0 0.0
    %144 = vmatmul.mubr.f32.gmra.mxu0 %v44
    %v145 = vpop.f32.mrf.mxu0
    %v146 = vadd.f32 0.0, %v145
    %v147 = vpop.f32.mrf.mxu0
    %148 = vmatprep.mubr.f32.mxu0 0.0
    %149 = vmatmul.mubr.f32.gmra.mxu0 %v47
    %v150 = vpop.f32.mrf.mxu0
    %v151 = vadd.f32 0.0, %v150
    %v152 = vpop.f32.mrf.mxu0
    %153 = vdwg.mxu0
    %154 = vst [vmem:[#allocation2] sm:$0xff] %v116
    %155 = vst [vmem:[#allocation2 + $0x8] sm:$0xff] %v121
    %156 = vst [vmem:[#allocation2 + $0x10] sm:$0xff] %v126
    %157 = vst [vmem:[#allocation2 + $0x18] sm:$0xff] %v131
    %158 = vst [vmem:[#allocation2 + $0x20] sm:$0xff] %v136
    %159 = vst [vmem:[#allocation2 + $0x28] sm:$0xff] %v141
    %160 = vst [vmem:[#allocation2 + $0x30] sm:$0xff] %v146
    %161 = vst [vmem:[#allocation2 + $0x38] sm:$0xff] %v151
    // Predicated region
    $region10: #{tpu_custom_call.1} parent=1 // pred_check
      _
    $region11: #{tpu_custom_call.1} parent=1 // pred_check_branch
      %163 = sbr.rel (0) target = $region13
    $region12: #{tpu_custom_call.1} parent=1 // pred_region
      %s165 = ssub.s32 1024, 1024
      %166 = vsyncadd [#allocation3], %s165
      %s167 = sshll.u32 [#allocation2], 4
      %s168 = int_to_ptr.vmem [resolvable:$true] %s167
      %173 = dma.vmem_to_hbm [thread:$0]  %s168, 1024, %s2, [#allocation3], 128, 128, 8
    $region13: #{tpu_custom_call.1} parent=1 // pred_fallthru
      _
    // Predicated region
    $region14: #{tpu_custom_call.1} parent=1 // pred_check
      _
    $region15: #{tpu_custom_call.1} parent=1 // pred_check_branch
      %175 = sbr.rel (0) target = $region17
    $region16: #{tpu_custom_call.1} parent=1 // pred_region
      %176 = dma.done [#allocation3], 1024
    $region17: #{tpu_custom_call.1} parent=1 // pred_fallthru
      _
    %177 = vsyncpa [#allocation3], 1

</llo_original>
